<compile_context>
chip_gen: v7x
topology: tpu7x:2x2x1
jax: 0.10.0
libtpu: 0.0.40
codegen_flags: <defaults>
</compile_context>

<pallas_src>
import jax
import jax.numpy as jnp
from jax.experimental import pallas as pl
from jax.experimental.pallas import tpu as pltpu

# ---------------------------- problem sizes ---------------------------------
B = 2            # batch_size
C = 4            # num_lead
L = 16           # seq_len
K = 3            # conv kernel size (padding=1 -> same length)
D = 32           # backbone_out_dim
NC = 8           # num_classes

# ------------------------- padded / derived sizes ---------------------------
BP = 8           # batch padded to a full sublane tile (dense output stores)
CK = C * K       # conv contraction (12)
CK1 = CK + 1     # + ones column that carries both biases (13)
DP = 128         # conv output channels padded lane-dense (carrier at index D)
NCP = 128        # head output padded lane-dense


# ------------------------------- kernel -------------------------------------
def predictor_kernel(xcol_ref, wcol_ref, hw_ref, out_ref):
    # Conv1d as one MXU matmul; conv bias is folded in via the ones column.
    conv = jnp.dot(xcol_ref[...], wcol_ref[...],
                   preferred_element_type=jnp.float32)        # (BP*L, DP)
    act = jnp.maximum(conv, 0.0)                               # ReLU (VPU)
    # Global mean-pool over the sequence: sublane reshape + sum (XLU) + scale.
    # The head-bias carrier channel (value 1 everywhere) stays exactly 1.
    pooled = jnp.sum(act.reshape(BP, L, DP), axis=1) * (1.0 / L)   # (BP, DP)
    # Linear head; head bias folded into hw via the carrier row. Lane-dense store.
    out_ref[...] = jnp.dot(pooled, hw_ref[...],
                           preferred_element_type=jnp.float32)     # (BP, NCP)


def _full_spec(shape):
    return pl.BlockSpec(shape, lambda: tuple(0 for _ in shape))


def predictor_forward(x, conv_w, conv_b, head_w, head_b):
    """x: (B, C, L) float32 -> (B, NC) float32."""
    Bx, Cx, Lx = x.shape

    # ---- im2col for Conv1d(k=3, pad=1): stays in XLA, fuses with producer ---
    x_pad = jnp.pad(x, ((0, 0), (0, 0), (1, 1)))                        # (B, C, L+2)
    cols = jnp.stack([x_pad[:, :, k:k + Lx] for k in range(K)], axis=-1)  # (B,C,L,K)
    x_col = jnp.transpose(cols, (0, 2, 1, 3)).reshape(Bx * Lx, Cx * K)    # (B*L, CK)

    # ---- augment: ones column (bias carrier) + pad batch rows to BP*L -------
    ones = jnp.ones((Bx * Lx, 1), jnp.float32)
    x_aug = jnp.concatenate([x_col, ones], axis=1)                        # (B*L, CK1)
    x_aug = jnp.pad(x_aug, ((0, (BP - Bx) * Lx), (0, 0)))                 # (BP*L, CK1)

    # ---- conv weights (D, C, K) -> augmented (CK1, DP) ----------------------
    w_col = conv_w.reshape(D, Cx * K).T                                   # (CK, D)
    w_aug = jnp.zeros((CK1, DP), jnp.float32)
    w_aug = w_aug.at[:CK, :D].set(w_col)
    w_aug = w_aug.at[CK, :D].set(conv_b)      # conv bias via ones column
    w_aug = w_aug.at[CK, D].set(1.0)          # carrier channel: relu(1)=1, mean=1

    # ---- head weights (NC, D) -> augmented (DP, NCP) ------------------------
    hw_aug = jnp.zeros((DP, NCP), jnp.float32)
    hw_aug = hw_aug.at[:D, :NC].set(head_w.T)
    hw_aug = hw_aug.at[D, :NC].set(head_b)    # head bias via carrier channel

    cost = pl.CostEstimate(
        flops=2 * BP * Lx * CK1 * DP + BP * Lx * DP + 2 * BP * DP * NCP,
        transcendentals=0,
        bytes_accessed=(x_aug.size + w_aug.size + hw_aug.size + BP * NCP) * 4,
    )

    out_pad = pl.pallas_call(
        predictor_kernel,
        out_shape=jax.ShapeDtypeStruct((BP, NCP), jnp.float32),
        grid=(),
        in_specs=[
            _full_spec(x_aug.shape),
            _full_spec(w_aug.shape),
            _full_spec(hw_aug.shape),
        ],
        out_specs=_full_spec((BP, NCP)),
        cost_estimate=cost,
    )(x_aug, w_aug, hw_aug)

    # slice the lane/sublane padding off outside the kernel
    return out_pad[:Bx, :NC]


# ------------------------------ reference -----------------------------------
def reference_forward(x, conv_w, conv_b, head_w, head_b):
    x_pad = jnp.pad(x, ((0, 0), (0, 0), (1, 1)))
    cols = jnp.stack([x_pad[:, :, k:k + L] for k in range(K)], axis=-1)   # (B,C,L,K)
    conv = jnp.einsum("bclk,dck->bdl", cols, conv_w) + conv_b[None, :, None]
    act = jnp.maximum(conv, 0.0)
    pooled = jnp.mean(act, axis=-1)                                       # (B, D)
    return pooled @ head_w.T + head_b


# -------------------------------- main ---------------------------------------
if __name__ == "__main__":
    key = jax.random.PRNGKey(0)
    kx, kw, kb, khw, khb = jax.random.split(key, 5)

    x = jax.random.normal(kx, (B, C, L), dtype=jnp.float32)

    # Deterministic parameter init (PyTorch-like uniform(-1/sqrt(fan_in), ...)).
    conv_fan = C * K
    conv_w = jax.random.uniform(kw, (D, C, K), jnp.float32,
                                -1.0 / jnp.sqrt(conv_fan), 1.0 / jnp.sqrt(conv_fan))
    conv_b = jax.random.uniform(kb, (D,), jnp.float32,
                                -1.0 / jnp.sqrt(conv_fan), 1.0 / jnp.sqrt(conv_fan))
    head_w = jax.random.uniform(khw, (NC, D), jnp.float32,
                                -1.0 / jnp.sqrt(D), 1.0 / jnp.sqrt(D))
    head_b = jax.random.uniform(khb, (NC,), jnp.float32,
                                -1.0 / jnp.sqrt(D), 1.0 / jnp.sqrt(D))

    out = predictor_forward(x, conv_w, conv_b, head_w, head_b)
    out = jax.block_until_ready(out)

    ref = reference_forward(x, conv_w, conv_b, head_w, head_b)
    assert out.shape == (B, NC)
    assert jnp.allclose(out, ref, atol=1e-4, rtol=1e-4), "mismatch vs reference"

    # TODO(synk): is_mae=True branch calls self.mae.forward_encoder, which is not
    # defined by the module's __init__, so only the standard backbone/head path
    # is implemented; foot is None in this configuration.
    print("KERNEL_OK")
</pallas_src>

<mosaic_0001>
module attributes {stable_mosaic.version = 11 : i64} {
  func.func @predictor_kernel(%arg0: memref<128x13xf32, #tpu.memory_space<vmem>>, %arg1: memref<13x128xf32, #tpu.memory_space<vmem>>, %arg2: memref<128x128xf32, #tpu.memory_space<vmem>>, %arg3: memref<8x128xf32, #tpu.memory_space<vmem>>) attributes {dimension_semantics = [], scalar_prefetch = 0 : i64, scratch_operands = 0 : i64, tpu.core_type = #tpu.core_type<tc>} {
    %c0 = arith.constant 0 : index
    %c0_0 = arith.constant 0 : index
    %0 = vector.load %arg0[%c0, %c0_0] : memref<128x13xf32, #tpu.memory_space<vmem>>, vector<128x13xf32>
    %c0_1 = arith.constant 0 : index
    %c0_2 = arith.constant 0 : index
    %1 = vector.load %arg1[%c0_1, %c0_2] : memref<13x128xf32, #tpu.memory_space<vmem>>, vector<13x128xf32>
    %cst = arith.constant dense<0.000000e+00> : vector<128x128xf32>
    %2 = tpu.matmul %0, %1, %cst {dimension_numbers = #tpu.dot_dimension_numbers<[1], [0], [0], [1], [0, 0, 1, 1], [], []>} : vector<128x13xf32>, vector<13x128xf32>, vector<128x128xf32> -> vector<128x128xf32>
    %cst_3 = arith.constant 0.000000e+00 : f32
    %3 = vector.broadcast %cst_3 : f32 to vector<128x128xf32>
    %4 = arith.maximumf %2, %3 : vector<128x128xf32>
    %5 = vector.shape_cast %4 : vector<128x128xf32> to vector<8x16x128xf32>
    %cst_4 = arith.constant dense<0.000000e+00> : vector<8x128xf32>
    %6 = vector.multi_reduction <add>, %5, %cst_4 [1] : vector<8x16x128xf32> to vector<8x128xf32>
    %cst_5 = arith.constant 6.250000e-02 : f32
    %7 = vector.broadcast %cst_5 : f32 to vector<8x128xf32>
    %8 = arith.mulf %6, %7 : vector<8x128xf32>
    %c0_6 = arith.constant 0 : index
    %c0_7 = arith.constant 0 : index
    %9 = vector.load %arg2[%c0_6, %c0_7] : memref<128x128xf32, #tpu.memory_space<vmem>>, vector<128x128xf32>
    %cst_8 = arith.constant dense<0.000000e+00> : vector<8x128xf32>
    %10 = tpu.matmul %8, %9, %cst_8 {dimension_numbers = #tpu.dot_dimension_numbers<[1], [0], [0], [1], [0, 0, 1, 1], [], []>} : vector<8x128xf32>, vector<128x128xf32>, vector<8x128xf32> -> vector<8x128xf32>
    %c0_9 = arith.constant 0 : index
    %c0_10 = arith.constant 0 : index
    %11 = vector.load %arg3[%c0_9, %c0_10] : memref<8x128xf32, #tpu.memory_space<vmem>>, vector<8x128xf32>
    tpu.vector_store %arg3[%c0_9, %c0_10], %10 {strides = array<i32>} : memref<8x128xf32, #tpu.memory_space<vmem>>, vector<8x128xf32>,
    return
  }
}

</mosaic_0001>

<llo_original>
// kernel: tpu_custom_call.1
$region0: #{tpu_custom_call.1}
  #allocation0 [shape = 'u32[]', space=smem, size = 0x4, offset = 0x4, fixed_abs, tag = 'smem constant byte address 0x4 - core index']
  #allocation1 [shape = 'u32[144,128]{1,0:T(1,128)}', space=vmem, size = 0x12000, scoped, tag = 'internal scratch']
  %s0 = inlined_call_operand.vmem [shape: f32[128,13], index: 0, kind: input, shape index: {}]
  %s1 = inlined_call_operand.vmem [shape: f32[13,128], index: 1, kind: input, shape index: {}]
  %s2 = inlined_call_operand.vmem [shape: f32[128,128], index: 2, kind: input, shape index: {}]
  %s3 = inlined_call_operand.hbm [shape: f32[8,128], index: 3, kind: output, shape index: {}]
  %s4 = sld [smem:[#allocation0]]
  $region22: #{tpu_custom_call.1} parent=0
    _
  %s6 = ssub.s32 1, %s4
  %s7 = scalar_select 0, %s6, %s4
  $region1: #{tpu_custom_call.1} parent=0
    #allocation2 [shape = 'u8[4096]{0}', space=vmem, size = 0x1000, scoped, tag = 'output window, operand 0, single buffered']
    #allocation3 [shape = 's32[1]{0}', space=sflag, size = 0x4, scoped, tag = 'scoped memory for tpu_custom_call.1']
    %8 = vsyncpa [#allocation3], 0
    // Predicated region
    $region2: #{tpu_custom_call.1} parent=1 // pred_check
      _
    $region3: #{tpu_custom_call.1} parent=1 // pred_check_branch
      %10 = sbr.rel (0) target = $region5
    $region4: #{tpu_custom_call.1} parent=1 // pred_region
      _
    $region5: #{tpu_custom_call.1} parent=1 // pred_fallthru
      _
    // Predicated region
    $region6: #{tpu_custom_call.1} parent=1 // pred_check
      _
    $region7: #{tpu_custom_call.1} parent=1 // pred_check_branch
      %12 = sbr.rel (0) target = $region9
    $region8: #{tpu_custom_call.1} parent=1 // pred_region
      _
    $region9: #{tpu_custom_call.1} parent=1 // pred_fallthru
      _
    // Predicated region
    $region10: #{tpu_custom_call.1} parent=1 // pred_check
      _
    $region11: #{tpu_custom_call.1} parent=1 // pred_check_branch
      %14 = sbr.rel (0) target = $region13
    $region12: #{tpu_custom_call.1} parent=1 // pred_region
      _
    $region13: #{tpu_custom_call.1} parent=1 // pred_fallthru
      _
    %v15 = vld [vmem:[%s0] sm:$0xff]
    %v16 = vld [vmem:[%s0 + $0x8] sm:$0xff]
    %v17 = vld [vmem:[%s0 + $0x10] sm:$0xff]
    %v18 = vld [vmem:[%s0 + $0x18] sm:$0xff]
    %v19 = vld [vmem:[%s0 + $0x20] sm:$0xff]
    %v20 = vld [vmem:[%s0 + $0x28] sm:$0xff]
    %v21 = vld [vmem:[%s0 + $0x30] sm:$0xff]
    %v22 = vld [vmem:[%s0 + $0x38] sm:$0xff]
    %v23 = vld [vmem:[%s0 + $0x40] sm:$0xff]
    %v24 = vld [vmem:[%s0 + $0x48] sm:$0xff]
    %v25 = vld [vmem:[%s0 + $0x50] sm:$0xff]
    %v26 = vld [vmem:[%s0 + $0x58] sm:$0xff]
    %v27 = vld [vmem:[%s0 + $0x60] sm:$0xff]
    %v28 = vld [vmem:[%s0 + $0x68] sm:$0xff]
    %v29 = vld [vmem:[%s0 + $0x70] sm:$0xff]
    %v30 = vld [vmem:[%s0 + $0x78] sm:$0xff]
    %v31 = vld [vmem:[%s1] sm:$0xff]
    %v32 = vld [vmem:[%s1 + $0x8] sm:$0x1f]
    %vm33 = vcmask 105472
    %v35 = vsel %vm33, %v15, 0
    %v38 = vsel %vm33, %v16, 0
    %v41 = vsel %vm33, %v17, 0
    %v44 = vsel %vm33, %v18, 0
    %v47 = vsel %vm33, %v19, 0
    %v50 = vsel %vm33, %v20, 0
    %v53 = vsel %vm33, %v21, 0
    %v56 = vsel %vm33, %v22, 0
    %v59 = vsel %vm33, %v23, 0
    %v62 = vsel %vm33, %v24, 0
    %v65 = vsel %vm33, %v25, 0
    %v68 = vsel %vm33, %v26, 0
    %v71 = vsel %vm33, %v27, 0
    %v74 = vsel %vm33, %v28, 0
    %v77 = vsel %vm33, %v29, 0
    %v80 = vsel %vm33, %v30, 0
    %vm82 = vcmask 1044480
    %v84 = vsel %vm82, %v32, 0
    %86 = vmatprep.subr.mxu0 0.0
    %87 = vmatpush1.msra.mxu0 %v31
    %88 = vmatprep.subr.mxu0 0.0
    %89 = vmatpush1.msra.mxu0 %v84
    %90 = vmatprep.subr.mxu0 0.0
    %91 = vmatpush1.msra.mxu0 0.0
    %92 = vmatprep.subr.mxu0 0.0
    %93 = vmatpush1.msra.mxu0 0.0
    %94 = vmatprep.subr.mxu0 0.0
    %95 = vmatpush1.msra.mxu0 0.0
    %96 = vmatprep.subr.mxu0 0.0
    %97 = vmatpush1.msra.mxu0 0.0
    %98 = vmatprep.subr.mxu0 0.0
    %99 = vmatpush1.msra.mxu0 0.0
    %100 = vmatprep.subr.mxu0 0.0
    %101 = vmatpush1.msra.mxu0 0.0
    %102 = vmatprep.subr.mxu0 0.0
    %103 = vmatpush1.msra.mxu0 0.0
    %104 = vmatprep.subr.mxu0 0.0
    %105 = vmatpush1.msra.mxu0 0.0
    %106 = vmatprep.subr.mxu0 0.0
    %107 = vmatpush1.msra.mxu0 0.0
    %108 = vmatprep.subr.mxu0 0.0
    %109 = vmatpush1.msra.mxu0 0.0
    %110 = vmatprep.subr.mxu0 0.0
    %111 = vmatpush1.msra.mxu0 0.0
    %112 = vmatprep.subr.mxu0 0.0
    %113 = vmatpush1.msra.mxu0 0.0
    %114 = vmatprep.subr.mxu0 0.0
    %115 = vmatpush1.msra.mxu0 0.0
    %116 = vmatprep.subr.mxu0 0.0
    %117 = vmatpush1.msra.mxu0 0.0
    %118 = vmatprep.subr.mxu0 0.0
    %119 = vmatpush1.msra.mxu0 0.0
    %120 = vmatprep.subr.mxu0 0.0
    %121 = vmatpush1.msra.mxu0 0.0
    %122 = vmatprep.subr.mxu0 0.0
    %123 = vmatpush1.msra.mxu0 0.0
    %124 = vmatprep.subr.mxu0 0.0
    %125 = vmatpush1.msra.mxu0 0.0
    %126 = vmatprep.subr.mxu0 0.0
    %127 = vmatpush1.msra.mxu0 0.0
    %128 = vmatprep.subr.mxu0 0.0
    %129 = vmatpush1.msra.mxu0 0.0
    %130 = vmatprep.subr.mxu0 0.0
    %131 = vmatpush1.msra.mxu0 0.0
    %132 = vmatprep.subr.mxu0 0.0
    %133 = vmatpush1.msra.mxu0 0.0
    %134 = vmatprep.subr.mxu0 0.0
    %135 = vmatpush1.msra.mxu0 0.0
    %136 = vmatprep.subr.mxu0 0.0
    %137 = vmatpush1.msra.mxu0 0.0
    %138 = vmatprep.subr.mxu0 0.0
    %139 = vmatpush1.msra.mxu0 0.0
    %140 = vmatprep.subr.mxu0 0.0
    %141 = vmatpush1.msra.mxu0 0.0
    %142 = vmatprep.subr.mxu0 0.0
    %143 = vmatpush1.msra.mxu0 0.0
    %144 = vmatprep.subr.mxu0 0.0
    %145 = vmatpush1.msra.mxu0 0.0
    %146 = vmatprep.subr.mxu0 0.0
    %147 = vmatpush1.msra.mxu0 0.0
    %148 = vmatprep.subr.mxu0 0.0
    %149 = vmatpush1.msra.mxu0 0.0
    %150 = vmatprep.mubr.f32.mxu0 0.0
    %151 = vmatmul.mubr.f32.gmra.mrb[0].mxu0 %v35
    %v152 = vpop.f32.mrb[0].mxu0
    %v153 = vadd.f32 0.0, %v152
    %v154 = vpop.f32.mrb[0].mxu0
    %155 = vmatprep.mubr.f32.mxu0 0.0
    %156 = vmatmul.mubr.f32.gmra.mrb[0].mxu0 %v38
    %v157 = vpop.f32.mrb[0].mxu0
    %v158 = vadd.f32 0.0, %v157
    %v159 = vpop.f32.mrb[0].mxu0
    %160 = vmatprep.mubr.f32.mxu0 0.0
    %161 = vmatmul.mubr.f32.gmra.mrb[0].mxu0 %v41
    %v162 = vpop.f32.mrb[0].mxu0
    %v163 = vadd.f32 0.0, %v162
    %v164 = vpop.f32.mrb[0].mxu0
    %165 = vmatprep.mubr.f32.mxu0 0.0
    %166 = vmatmul.mubr.f32.gmra.mrb[0].mxu0 %v44
    %v167 = vpop.f32.mrb[0].mxu0
    %v168 = vadd.f32 0.0, %v167
    %v169 = vpop.f32.mrb[0].mxu0
    %170 = vmatprep.mubr.f32.mxu0 0.0
    %171 = vmatmul.mubr.f32.gmra.mrb[0].mxu0 %v47
    %v172 = vpop.f32.mrb[0].mxu0
    %v173 = vadd.f32 0.0, %v172
    %v174 = vpop.f32.mrb[0].mxu0
    %175 = vmatprep.mubr.f32.mxu0 0.0
    %176 = vmatmul.mubr.f32.gmra.mrb[0].mxu0 %v50
    %v177 = vpop.f32.mrb[0].mxu0
    %v178 = vadd.f32 0.0, %v177
    %v179 = vpop.f32.mrb[0].mxu0
    %180 = vmatprep.mubr.f32.mxu0 0.0
    %181 = vmatmul.mubr.f32.gmra.mrb[0].mxu0 %v53
    %v182 = vpop.f32.mrb[0].mxu0
    %v183 = vadd.f32 0.0, %v182
    %v184 = vpop.f32.mrb[0].mxu0
    %185 = vmatprep.mubr.f32.mxu0 0.0
    %186 = vmatmul.mubr.f32.gmra.mrb[0].mxu0 %v56
    %v187 = vpop.f32.mrb[0].mxu0
    %v188 = vadd.f32 0.0, %v187
    %v189 = vpop.f32.mrb[0].mxu0
    %190 = vmatprep.mubr.f32.mxu0 0.0
    %191 = vmatmul.mubr.f32.gmra.mrb[0].mxu0 %v59
    %v192 = vpop.f32.mrb[0].mxu0
    %v193 = vadd.f32 0.0, %v192
    %v194 = vpop.f32.mrb[0].mxu0
    %195 = vmatprep.mubr.f32.mxu0 0.0
    %196 = vmatmul.mubr.f32.gmra.mrb[0].mxu0 %v62
    %v197 = vpop.f32.mrb[0].mxu0
    %v198 = vadd.f32 0.0, %v197
    %v199 = vpop.f32.mrb[0].mxu0
    %200 = vmatprep.mubr.f32.mxu0 0.0
    %201 = vmatmul.mubr.f32.gmra.mrb[0].mxu0 %v65
    %v202 = vpop.f32.mrb[0].mxu0
    %v203 = vadd.f32 0.0, %v202
    %v204 = vpop.f32.mrb[0].mxu0
    %205 = vmatprep.mubr.f32.mxu0 0.0
    %206 = vmatmul.mubr.f32.gmra.mrb[0].mxu0 %v68
    %v207 = vpop.f32.mrb[0].mxu0
    %v208 = vadd.f32 0.0, %v207
    %v209 = vpop.f32.mrb[0].mxu0
    %210 = vmatprep.mubr.f32.mxu0 0.0
    %211 = vmatmul.mubr.f32.gmra.mrb[0].mxu0 %v71
    %v212 = vpop.f32.mrb[0].mxu0
    %v213 = vadd.f32 0.0, %v212
    %v214 = vpop.f32.mrb[0].mxu0
    %215 = vmatprep.mubr.f32.mxu0 0.0
    %216 = vmatmul.mubr.f32.gmra.mrb[0].mxu0 %v74
    %v217 = vpop.f32.mrb[0].mxu0
    %v218 = vadd.f32 0.0, %v217
    %v219 = vpop.f32.mrb[0].mxu0
    %220 = vmatprep.mubr.f32.mxu0 0.0
    %221 = vmatmul.mubr.f32.gmra.mrb[0].mxu0 %v77
    %v222 = vpop.f32.mrb[0].mxu0
    %v223 = vadd.f32 0.0, %v222
    %v224 = vpop.f32.mrb[0].mxu0
    %225 = vmatprep.mubr.f32.mxu0 0.0
    %226 = vmatmul.mubr.f32.gmra.mrb[0].mxu0 %v80
    %v227 = vpop.f32.mrb[0].mxu0
    %v228 = vadd.f32 0.0, %v227
    %v229 = vpop.f32.mrb[0].mxu0
    %230 = vdwg.mxu0
    %v231 = vmax.f32 %v153, 0.0
    %v232 = vmax.f32 %v158, 0.0
    %v233 = vmax.f32 %v163, 0.0
    %v234 = vmax.f32 %v168, 0.0
    %v235 = vmax.f32 %v173, 0.0
    %v236 = vmax.f32 %v178, 0.0
    %v237 = vmax.f32 %v183, 0.0
    %v238 = vmax.f32 %v188, 0.0
    %v239 = vmax.f32 %v193, 0.0
    %v240 = vmax.f32 %v198, 0.0
    %v241 = vmax.f32 %v203, 0.0
    %v242 = vmax.f32 %v208, 0.0
    %v243 = vmax.f32 %v213, 0.0
    %v244 = vmax.f32 %v218, 0.0
    %v245 = vmax.f32 %v223, 0.0
    %v246 = vmax.f32 %v228, 0.0
    %v247 = vadd.f32 %v231, %v232
    %v248 = vrot.slane %v247, 4
    %v249 = vadd.f32 %v247, %v248
    %v250 = vrot.slane %v249, 2
    %v251 = vadd.f32 %v249, %v250
    %v252 = vrot.slane %v251, 1
    %v253 = vadd.f32 %v251, %v252
    %v254 = vadd.f32 %v233, %v234
    %v255 = vrot.slane %v254, 4
    %v256 = vadd.f32 %v254, %v255
    %v257 = vrot.slane %v256, 2
    %v258 = vadd.f32 %v256, %v257
    %v259 = vrot.slane %v258, 1
    %v260 = vadd.f32 %v258, %v259
    %v261 = vadd.f32 %v235, %v236
    %v262 = vrot.slane %v261, 4
    %v263 = vadd.f32 %v261, %v262
    %v264 = vrot.slane %v263, 2
    %v265 = vadd.f32 %v263, %v264
    %v266 = vrot.slane %v265, 1
    %v267 = vadd.f32 %v265, %v266
    %v268 = vadd.f32 %v237, %v238
    %v269 = vrot.slane %v268, 4
    %v270 = vadd.f32 %v268, %v269
    %v271 = vrot.slane %v270, 2
    %v272 = vadd.f32 %v270, %v271
    %v273 = vrot.slane %v272, 1
    %v274 = vadd.f32 %v272, %v273
    %v275 = vadd.f32 %v239, %v240
    %v276 = vrot.slane %v275, 4
    %v277 = vadd.f32 %v275, %v276
    %v278 = vrot.slane %v277, 2
    %v279 = vadd.f32 %v277, %v278
    %v280 = vrot.slane %v279, 1
    %v281 = vadd.f32 %v279, %v280
    %v282 = vadd.f32 %v241, %v242
    %v283 = vrot.slane %v282, 4
    %v284 = vadd.f32 %v282, %v283
    %v285 = vrot.slane %v284, 2
    %v286 = vadd.f32 %v284, %v285
    %v287 = vrot.slane %v286, 1
    %v288 = vadd.f32 %v286, %v287
    %v289 = vadd.f32 %v243, %v244
    %v290 = vrot.slane %v289, 4
    %v291 = vadd.f32 %v289, %v290
    %v292 = vrot.slane %v291, 2
    %v293 = vadd.f32 %v291, %v292
    %v294 = vrot.slane %v293, 1
    %v295 = vadd.f32 %v293, %v294
    %v296 = vadd.f32 %v245, %v246
    %v297 = vrot.slane %v296, 4
    %v298 = vadd.f32 %v296, %v297
    %v299 = vrot.slane %v298, 2
    %v300 = vadd.f32 %v298, %v299
    %v301 = vrot.slane %v300, 1
    %v302 = vadd.f32 %v300, %v301
    %v303 = vmul.f32 %v253, 0.0625
    %v304 = vmul.f32 %v260, 0.0625
    %v305 = vmul.f32 %v267, 0.0625
    %v306 = vmul.f32 %v274, 0.0625
    %v307 = vmul.f32 %v281, 0.0625
    %v308 = vmul.f32 %v288, 0.0625
    %v309 = vmul.f32 %v295, 0.0625
    %v310 = vmul.f32 %v302, 0.0625
    %v311 = vld [vmem:[%s2] sm:$0xff]
    %v312 = vld [vmem:[%s2 + $0x8] sm:$0xff]
    %v313 = vld [vmem:[%s2 + $0x10] sm:$0xff]
    %v314 = vld [vmem:[%s2 + $0x18] sm:$0xff]
    %v315 = vld [vmem:[%s2 + $0x20] sm:$0xff]
    %v316 = vld [vmem:[%s2 + $0x28] sm:$0xff]
    %v317 = vld [vmem:[%s2 + $0x30] sm:$0xff]
    %v318 = vld [vmem:[%s2 + $0x38] sm:$0xff]
    %v319 = vld [vmem:[%s2 + $0x40] sm:$0xff]
    %v320 = vld [vmem:[%s2 + $0x48] sm:$0xff]
    %v321 = vld [vmem:[%s2 + $0x50] sm:$0xff]
    %v322 = vld [vmem:[%s2 + $0x58] sm:$0xff]
    %v323 = vld [vmem:[%s2 + $0x60] sm:$0xff]
    %v324 = vld [vmem:[%s2 + $0x68] sm:$0xff]
    %v325 = vld [vmem:[%s2 + $0x70] sm:$0xff]
    %v326 = vld [vmem:[%s2 + $0x78] sm:$0xff]
    %vm335 = vcmask 1041409
    %v336 = vsel %vm335, %v304, %v303
    %vm337 = vcmask 1042434
    %v338 = vsel %vm337, %v305, %v336
    %vm339 = vcmask 1043459
    %v340 = vsel %vm339, %v306, %v338
    %vm341 = vcmask 1044484
    %v342 = vsel %vm341, %v307, %v340
    %vm343 = vcmask 1045509
    %v344 = vsel %vm343, %v308, %v342
    %vm345 = vcmask 1046534
    %v346 = vsel %vm345, %v309, %v344
    %vm347 = vcmask 1047559
    %v348 = vsel %vm347, %v310, %v346
    %350 = vmatprep.subr.mxu0 0.0
    %351 = vmatpush1.msra.mxu0 %v311
    %352 = vmatprep.subr.mxu0 0.0
    %353 = vmatpush1.msra.mxu0 %v312
    %354 = vmatprep.subr.mxu0 0.0
    %355 = vmatpush1.msra.mxu0 %v313
    %356 = vmatprep.subr.mxu0 0.0
    %357 = vmatpush1.msra.mxu0 %v314
    %358 = vmatprep.subr.mxu0 0.0
    %359 = vmatpush1.msra.mxu0 %v315
    %360 = vmatprep.subr.mxu0 0.0
    %361 = vmatpush1.msra.mxu0 %v316
    %362 = vmatprep.subr.mxu0 0.0
    %363 = vmatpush1.msra.mxu0 %v317
    %364 = vmatprep.subr.mxu0 0.0
    %365 = vmatpush1.msra.mxu0 %v318
    %366 = vmatprep.subr.mxu0 0.0
    %367 = vmatpush1.msra.mxu0 %v319
    %368 = vmatprep.subr.mxu0 0.0
    %369 = vmatpush1.msra.mxu0 %v320
    %370 = vmatprep.subr.mxu0 0.0
    %371 = vmatpush1.msra.mxu0 %v321
    %372 = vmatprep.subr.mxu0 0.0
    %373 = vmatpush1.msra.mxu0 %v322
    %374 = vmatprep.subr.mxu0 0.0
    %375 = vmatpush1.msra.mxu0 %v323
    %376 = vmatprep.subr.mxu0 0.0
    %377 = vmatpush1.msra.mxu0 %v324
    %378 = vmatprep.subr.mxu0 0.0
    %379 = vmatpush1.msra.mxu0 %v325
    %380 = vmatprep.subr.mxu0 0.0
    %381 = vmatpush1.msra.mxu0 %v326
    %382 = vmatprep.subr.mxu0 0.0
    %383 = vmatpush1.msra.mxu0 0.0
    %384 = vmatprep.subr.mxu0 0.0
    %385 = vmatpush1.msra.mxu0 0.0
    %386 = vmatprep.subr.mxu0 0.0
    %387 = vmatpush1.msra.mxu0 0.0
    %388 = vmatprep.subr.mxu0 0.0
    %389 = vmatpush1.msra.mxu0 0.0
    %390 = vmatprep.subr.mxu0 0.0
    %391 = vmatpush1.msra.mxu0 0.0
    %392 = vmatprep.subr.mxu0 0.0
    %393 = vmatpush1.msra.mxu0 0.0
    %394 = vmatprep.subr.mxu0 0.0
    %395 = vmatpush1.msra.mxu0 0.0
    %396 = vmatprep.subr.mxu0 0.0
    %397 = vmatpush1.msra.mxu0 0.0
    %398 = vmatprep.subr.mxu0 0.0
    %399 = vmatpush1.msra.mxu0 0.0
    %400 = vmatprep.subr.mxu0 0.0
    %401 = vmatpush1.msra.mxu0 0.0
    %402 = vmatprep.subr.mxu0 0.0
    %403 = vmatpush1.msra.mxu0 0.0
    %404 = vmatprep.subr.mxu0 0.0
    %405 = vmatpush1.msra.mxu0 0.0
    %406 = vmatprep.subr.mxu0 0.0
    %407 = vmatpush1.msra.mxu0 0.0
    %408 = vmatprep.subr.mxu0 0.0
    %409 = vmatpush1.msra.mxu0 0.0
    %410 = vmatprep.subr.mxu0 0.0
    %411 = vmatpush1.msra.mxu0 0.0
    %412 = vmatprep.subr.mxu0 0.0
    %413 = vmatpush1.msra.mxu0 0.0
    %414 = vmatprep.mubr.f32.mxu0 0.0
    %415 = vmatmul.mubr.f32.gmra.mrb[0].mxu0 %v348
    %v416 = vpop.f32.mrb[0].mxu0
    %v417 = vadd.f32 0.0, %v416
    %v418 = vpop.f32.mrb[0].mxu0
    %419 = vdwg.mxu0
    %420 = vst [vmem:[#allocation2] sm:$0xff] %v417
    // Predicated region
    $region14: #{tpu_custom_call.1} parent=1 // pred_check
      _
    $region15: #{tpu_custom_call.1} parent=1 // pred_check_branch
      %422 = sbr.rel (0) target = $region17
    $region16: #{tpu_custom_call.1} parent=1 // pred_region
      %s424 = ssub.s32 128, 128
      %425 = vsyncadd [#allocation3], %s424
      %s427 = sshll.u32 [#allocation2], 4
      %s428 = int_to_ptr.vmem [resolvable:$true] %s427
      %430 = dma.vmem_to_hbm [thread:$0]  %s428, 128, %s3, [#allocation3]
    $region17: #{tpu_custom_call.1} parent=1 // pred_fallthru
      _
    // Predicated region
    $region18: #{tpu_custom_call.1} parent=1 // pred_check
      _
    $region19: #{tpu_custom_call.1} parent=1 // pred_check_branch
      %432 = sbr.rel (0) target = $region21
    $region20: #{tpu_custom_call.1} parent=1 // pred_region
      %433 = dma.done [#allocation3], 128
    $region21: #{tpu_custom_call.1} parent=1 // pred_fallthru
      _
    %434 = vsyncpa [#allocation3], 1

</llo_original>
